<compile_context>
chip_gen: v5e
topology: v5e:2x2
jax: 0.10.0
libtpu: 0.0.40
codegen_flags: <defaults>
</compile_context>

<pallas_src>
import functools

import jax
import jax.numpy as jnp
from jax.experimental import pallas as pl
from jax.experimental.pallas import tpu as pltpu

EPS = 1e-5
SUBLANE = 8


def _inception_kernel(x_ref, w_ref, rc_ref, o_ref, *, H, W, Cin, Cconv):
    """x_ref:  (1, Cp, HW)   input, channels padded to Cp (channel Cin == 1.0).
    w_ref:  (Cconv, 25*Cp)   fused 1x1/3x3/5x5 weights, BN scale folded in,
                             bias in the (center tap, channel Cin) column.
    rc_ref: (2, HW) int32    per-lane row index (row 0) / col index (row 1).
    o_ref:  (1, Cconv+Cin, HW) output (conv branches, then max-pool branch)."""
    HW = H * W
    x = x_ref[0]                                    # (Cp, HW), lane dim = HW

    # per-lane spatial coordinates -> per-tap boundary masks (VPU compares,
    # no mask DMA from HBM)
    row = rc_ref[0:1, :]                            # (1, HW) int32
    col = rc_ref[1:2, :]
    row_ok = {d: (row + d >= 0) & (row + d < H) for d in range(-2, 3)}
    col_ok = {d: (col + d >= 0) & (col + d < W) for d in range(-2, 3)}

    # ---- im2col via 25 lane rolls + boundary masks --------------------------
    rolled = {}
    taps = []
    for kh in range(5):
        for kw in range(5):
            dh, dw = kh - 2, kw - 2
            shift = (-(dh * W + dw)) % HW
            r = x if shift == 0 else pltpu.roll(x, shift=shift, axis=1)
            rolled[(dh, dw)] = r
            if dh == 0 and dw == 0:
                taps.append(r)                      # center tap: always valid
            else:
                taps.append(jnp.where(row_ok[dh] & col_ok[dw], r, 0.0))
    # each chunk is a full (8, HW) sublane tile -> tile-aligned assembly
    patches = jnp.concatenate(taps, axis=0)         # (25*Cp, HW)

    # ---- fused 1x1/3x3/5x5 conv + folded BN + bias (constant-1 channel) -----
    y = jnp.dot(w_ref[...], patches, preferred_element_type=jnp.float32)
    y = jnp.maximum(y, 0.0)                         # (Cconv, HW)

    # ---- 3x3 max-pool, stride 1, pad 1 (select-masked, reuses inner taps) ---
    yp = rolled[(0, 0)]                             # center, always valid
    for dh in (-1, 0, 1):
        for dw in (-1, 0, 1):
            if dh == 0 and dw == 0:
                continue
            ok = row_ok[dh] & col_ok[dw]
            yp = jnp.where(ok, jnp.maximum(yp, rolled[(dh, dw)]), yp)

    # ---- two direct lane-dense stores (no output concat / VMEM temp) --------
    o_ref[0, :Cconv, :] = y.astype(o_ref.dtype)
    o_ref[0, Cconv:, :] = yp[:Cin].astype(o_ref.dtype)


@jax.jit
def inception_block_pallas(x_nchw, params):
    """x_nchw: (N, Cin, H, W) float32. Returns (N, C1+C3+C5+Cin, H, W)."""
    N, Cin, H, W = x_nchw.shape
    HW = H * W
    # pad channels (+1 constant bias channel) up to the 8-sublane tile
    Cp = -((Cin + 1) // -SUBLANE) * SUBLANE

    # ---- fold eval-mode BN (+ conv bias) into the conv weights / bias -------
    def fold(w, prefix):
        gamma, beta = params[prefix + "_gamma"], params[prefix + "_beta"]
        mean, var = params[prefix + "_mean"], params[prefix + "_var"]
        cbias = params[prefix + "_bias"]
        scale = gamma / jnp.sqrt(var + EPS)
        return (w.astype(jnp.float32) * scale[:, None, None, None],
                (cbias - mean) * scale + beta)

    w1f, b1 = fold(params["w1"], "b1")
    w3f, b3 = fold(params["w3"], "b2")
    w5f, b5 = fold(params["w5"], "b3")
    C1, C3, C5 = w1f.shape[0], w3f.shape[0], w5f.shape[0]
    Cconv = C1 + C3 + C5
    Ctot = Cconv + Cin

    # ---- embed 1x1 / 3x3 kernels into the 5x5 tap grid, pad Cin -> Cp -------
    w1p = jnp.pad(w1f, ((0, 0), (0, 0), (2, 2), (2, 2)))
    w3p = jnp.pad(w3f, ((0, 0), (0, 0), (1, 1), (1, 1)))
    w_all = jnp.concatenate([w1p, w3p, w5f], axis=0)               # (Cconv, Cin, 5, 5)
    b_all = jnp.concatenate([b1, b3, b5], axis=0)                  # (Cconv,)
    w_pad = jnp.pad(w_all, ((0, 0), (0, Cp - Cin), (0, 0), (0, 0)))
    # bias rides on the constant-1 channel (index Cin) at the center tap
    w_pad = w_pad.at[:, Cin, 2, 2].set(b_all)
    # K ordering (kh, kw, ci) matches the tap-major patch stacking in-kernel
    w_comb = jnp.transpose(w_pad, (0, 2, 3, 1)).reshape(Cconv, 25 * Cp)

    # ---- channel-pad the input; channel Cin = 1.0 carries the bias ----------
    x = x_nchw.astype(jnp.float32)
    ones = jnp.ones((N, 1, H, W), jnp.float32)
    zeros = jnp.zeros((N, Cp - Cin - 1, H, W), jnp.float32)
    x_pad = jnp.concatenate([x, ones, zeros], axis=1).reshape(N, Cp, HW)

    # ---- tiny per-lane (row, col) index operand (replaces the big masks) ----
    rr = jnp.broadcast_to(jnp.arange(H, dtype=jnp.int32)[:, None], (H, W))
    cc = jnp.broadcast_to(jnp.arange(W, dtype=jnp.int32)[None, :], (H, W))
    rc_idx = jnp.stack([rr.reshape(HW), cc.reshape(HW)], axis=0)   # (2, HW)

    kernel = functools.partial(_inception_kernel, H=H, W=W, Cin=Cin, Cconv=Cconv)

    out = pl.pallas_call(
        kernel,
        out_shape=jax.ShapeDtypeStruct((N, Ctot, HW), jnp.float32),
        grid=(N,),
        in_specs=[
            pl.BlockSpec((1, Cp, HW), lambda n: (n, 0, 0)),
            pl.BlockSpec((Cconv, 25 * Cp), lambda n: (0, 0)),
            pl.BlockSpec((2, HW), lambda n: (0, 0)),
        ],
        out_specs=pl.BlockSpec((1, Ctot, HW), lambda n: (n, 0, 0)),
        compiler_params=pltpu.CompilerParams(
            dimension_semantics=("parallel",)),
    )(x_pad, w_comb, rc_idx)

    return out.reshape(N, Ctot, H, W)                              # free reshape


# ------------------------- pure-JAX reference (for checking) ----------------
def _ref_conv_bn_relu(x, w, bias, gamma, beta, mean, var, pad):
    y = jax.lax.conv_general_dilated(
        x, w, window_strides=(1, 1), padding=[(pad, pad), (pad, pad)],
        dimension_numbers=("NCHW", "OIHW", "NCHW"))
    y = y + bias[None, :, None, None]
    y = (y - mean[None, :, None, None]) / jnp.sqrt(var[None, :, None, None] + EPS)
    y = y * gamma[None, :, None, None] + beta[None, :, None, None]
    return jnp.maximum(y, 0.0)


def _ref_inception(x, p):
    y1 = _ref_conv_bn_relu(x, p["w1"], p["b1_bias"], p["b1_gamma"],
                           p["b1_beta"], p["b1_mean"], p["b1_var"], 0)
    y3 = _ref_conv_bn_relu(x, p["w3"], p["b2_bias"], p["b2_gamma"],
                           p["b2_beta"], p["b2_mean"], p["b2_var"], 1)
    y5 = _ref_conv_bn_relu(x, p["w5"], p["b3_bias"], p["b3_gamma"],
                           p["b3_beta"], p["b3_mean"], p["b3_var"], 2)
    y4 = jax.lax.reduce_window(
        x, -jnp.inf, jax.lax.max, (1, 1, 3, 3), (1, 1, 1, 1),
        padding=[(0, 0), (0, 0), (1, 1), (1, 1)])
    return jnp.concatenate([y1, y3, y5, y4], axis=1)


# ------------------------------- main ----------------------------------------
if __name__ == "__main__":
    N, Cin, H, W = 2, 4, 16, 16
    red_1x1, red_3x3, red_5x5 = 8, 8, 8

    key = jax.random.PRNGKey(0)
    keys = jax.random.split(key, 20)
    k = iter(keys)

    def bn_params(prefix, c, ki):
        k0, k1, k2, k3 = jax.random.split(ki, 4)
        return {
            prefix + "_gamma": jax.random.uniform(k0, (c,), jnp.float32, 0.5, 1.5),
            prefix + "_beta": jax.random.normal(k1, (c,), jnp.float32) * 0.1,
            prefix + "_mean": jax.random.normal(k2, (c,), jnp.float32) * 0.1,
            prefix + "_var": jax.random.uniform(k3, (c,), jnp.float32, 0.5, 1.5),
        }

    params = {
        "w1": jax.random.normal(next(k), (red_1x1, Cin, 1, 1), jnp.float32) * 0.2,
        "b1_bias": jax.random.normal(next(k), (red_1x1,), jnp.float32) * 0.1,
        "w3": jax.random.normal(next(k), (red_3x3, Cin, 3, 3), jnp.float32) * 0.1,
        "b2_bias": jax.random.normal(next(k), (red_3x3,), jnp.float32) * 0.1,
        "w5": jax.random.normal(next(k), (red_5x5, Cin, 5, 5), jnp.float32) * 0.05,
        "b3_bias": jax.random.normal(next(k), (red_5x5,), jnp.float32) * 0.1,
    }
    params.update(bn_params("b1", red_1x1, next(k)))
    params.update(bn_params("b2", red_3x3, next(k)))
    params.update(bn_params("b3", red_5x5, next(k)))

    x = jax.random.normal(next(k), (N, Cin, H, W), jnp.float32)

    out = inception_block_pallas(x, params)
    out = jax.block_until_ready(out)

    ref = _ref_inception(x, params)
    assert out.shape == (N, red_1x1 + red_3x3 + red_5x5 + Cin, H, W), out.shape
    assert jnp.allclose(out, ref, atol=1e-4, rtol=1e-4), float(
        jnp.max(jnp.abs(out - ref)))

    print("KERNEL_OK")
</pallas_src>

<mosaic_0001>
module attributes {stable_mosaic.version = 11 : i64} {
  func.func @_inception_kernel(%arg0: i32, %arg1: memref<1x8x256xf32, #tpu.memory_space<vmem>>, %arg2: memref<24x200xf32, #tpu.memory_space<vmem>>, %arg3: memref<2x256xi32, #tpu.memory_space<vmem>>, %arg4: memref<1x28x256xf32, #tpu.memory_space<vmem>>) attributes {dimension_semantics = [#tpu.dimension_semantics<parallel>], iteration_bounds = array<i64: 2>, scalar_prefetch = 0 : i64, scratch_operands = 0 : i64, tpu.core_type = #tpu.core_type<tc>, window_params = [{transform_indices = @transform_0, window_bounds = array<i64: 1, 8, 256>}, {pipeline_mode = #tpu.pipeline_mode<synchronous>, transform_indices = @transform_1, window_bounds = array<i64: 24, 200>}, {pipeline_mode = #tpu.pipeline_mode<synchronous>, transform_indices = @transform_2, window_bounds = array<i64: 2, 256>}, {transform_indices = @transform_3, window_bounds = array<i64: 1, 28, 256>}]} {
    %c0 = arith.constant 0 : index
    %c0_0 = arith.constant 0 : index
    %c0_1 = arith.constant 0 : index
    %0 = vector.load %arg1[%c0, %c0_0, %c0_1] : memref<1x8x256xf32, #tpu.memory_space<vmem>>, vector<1x8x256xf32>
    %1 = vector.shape_cast %0 : vector<1x8x256xf32> to vector<8x256xf32>
    %c0_2 = arith.constant 0 : index
    %c0_3 = arith.constant 0 : index
    %2 = vector.load %arg3[%c0_2, %c0_3] : memref<2x256xi32, #tpu.memory_space<vmem>>, vector<1x256xi32>
    %c1 = arith.constant 1 : index
    %c0_4 = arith.constant 0 : index
    %3 = vector.load %arg3[%c1, %c0_4] : memref<2x256xi32, #tpu.memory_space<vmem>>, vector<1x256xi32>
    %c-2_i32 = arith.constant -2 : i32
    %4 = vector.broadcast %c-2_i32 : i32 to vector<1x256xi32>
    %5 = arith.addi %2, %4 : vector<1x256xi32>
    %c0_i32 = arith.constant 0 : i32
    %6 = vector.broadcast %c0_i32 : i32 to vector<1x256xi32>
    %7 = arith.cmpi sge, %5, %6 : vector<1x256xi32>
    %c-2_i32_5 = arith.constant -2 : i32
    %8 = vector.broadcast %c-2_i32_5 : i32 to vector<1x256xi32>
    %9 = arith.addi %2, %8 : vector<1x256xi32>
    %c16_i32 = arith.constant 16 : i32
    %10 = vector.broadcast %c16_i32 : i32 to vector<1x256xi32>
    %11 = arith.cmpi slt, %9, %10 : vector<1x256xi32>
    %12 = arith.andi %7, %11 : vector<1x256xi1>
    %c-1_i32 = arith.constant -1 : i32
    %13 = vector.broadcast %c-1_i32 : i32 to vector<1x256xi32>
    %14 = arith.addi %2, %13 : vector<1x256xi32>
    %c0_i32_6 = arith.constant 0 : i32
    %15 = vector.broadcast %c0_i32_6 : i32 to vector<1x256xi32>
    %16 = arith.cmpi sge, %14, %15 : vector<1x256xi32>
    %c-1_i32_7 = arith.constant -1 : i32
    %17 = vector.broadcast %c-1_i32_7 : i32 to vector<1x256xi32>
    %18 = arith.addi %2, %17 : vector<1x256xi32>
    %c16_i32_8 = arith.constant 16 : i32
    %19 = vector.broadcast %c16_i32_8 : i32 to vector<1x256xi32>
    %20 = arith.cmpi slt, %18, %19 : vector<1x256xi32>
    %21 = arith.andi %16, %20 : vector<1x256xi1>
    %c0_i32_9 = arith.constant 0 : i32
    %22 = vector.broadcast %c0_i32_9 : i32 to vector<1x256xi32>
    %23 = arith.addi %2, %22 : vector<1x256xi32>
    %c0_i32_10 = arith.constant 0 : i32
    %24 = vector.broadcast %c0_i32_10 : i32 to vector<1x256xi32>
    %25 = arith.cmpi sge, %23, %24 : vector<1x256xi32>
    %c0_i32_11 = arith.constant 0 : i32
    %26 = vector.broadcast %c0_i32_11 : i32 to vector<1x256xi32>
    %27 = arith.addi %2, %26 : vector<1x256xi32>
    %c16_i32_12 = arith.constant 16 : i32
    %28 = vector.broadcast %c16_i32_12 : i32 to vector<1x256xi32>
    %29 = arith.cmpi slt, %27, %28 : vector<1x256xi32>
    %30 = arith.andi %25, %29 : vector<1x256xi1>
    %c1_i32 = arith.constant 1 : i32
    %31 = vector.broadcast %c1_i32 : i32 to vector<1x256xi32>
    %32 = arith.addi %2, %31 : vector<1x256xi32>
    %c0_i32_13 = arith.constant 0 : i32
    %33 = vector.broadcast %c0_i32_13 : i32 to vector<1x256xi32>
    %34 = arith.cmpi sge, %32, %33 : vector<1x256xi32>
    %c1_i32_14 = arith.constant 1 : i32
    %35 = vector.broadcast %c1_i32_14 : i32 to vector<1x256xi32>
    %36 = arith.addi %2, %35 : vector<1x256xi32>
    %c16_i32_15 = arith.constant 16 : i32
    %37 = vector.broadcast %c16_i32_15 : i32 to vector<1x256xi32>
    %38 = arith.cmpi slt, %36, %37 : vector<1x256xi32>
    %39 = arith.andi %34, %38 : vector<1x256xi1>
    %c2_i32 = arith.constant 2 : i32
    %40 = vector.broadcast %c2_i32 : i32 to vector<1x256xi32>
    %41 = arith.addi %2, %40 : vector<1x256xi32>
    %c0_i32_16 = arith.constant 0 : i32
    %42 = vector.broadcast %c0_i32_16 : i32 to vector<1x256xi32>
    %43 = arith.cmpi sge, %41, %42 : vector<1x256xi32>
    %c2_i32_17 = arith.constant 2 : i32
    %44 = vector.broadcast %c2_i32_17 : i32 to vector<1x256xi32>
    %45 = arith.addi %2, %44 : vector<1x256xi32>
    %c16_i32_18 = arith.constant 16 : i32
    %46 = vector.broadcast %c16_i32_18 : i32 to vector<1x256xi32>
    %47 = arith.cmpi slt, %45, %46 : vector<1x256xi32>
    %48 = arith.andi %43, %47 : vector<1x256xi1>
    %c-2_i32_19 = arith.constant -2 : i32
    %49 = vector.broadcast %c-2_i32_19 : i32 to vector<1x256xi32>
    %50 = arith.addi %3, %49 : vector<1x256xi32>
    %c0_i32_20 = arith.constant 0 : i32
    %51 = vector.broadcast %c0_i32_20 : i32 to vector<1x256xi32>
    %52 = arith.cmpi sge, %50, %51 : vector<1x256xi32>
    %c-2_i32_21 = arith.constant -2 : i32
    %53 = vector.broadcast %c-2_i32_21 : i32 to vector<1x256xi32>
    %54 = arith.addi %3, %53 : vector<1x256xi32>
    %c16_i32_22 = arith.constant 16 : i32
    %55 = vector.broadcast %c16_i32_22 : i32 to vector<1x256xi32>
    %56 = arith.cmpi slt, %54, %55 : vector<1x256xi32>
    %57 = arith.andi %52, %56 : vector<1x256xi1>
    %c-1_i32_23 = arith.constant -1 : i32
    %58 = vector.broadcast %c-1_i32_23 : i32 to vector<1x256xi32>
    %59 = arith.addi %3, %58 : vector<1x256xi32>
    %c0_i32_24 = arith.constant 0 : i32
    %60 = vector.broadcast %c0_i32_24 : i32 to vector<1x256xi32>
    %61 = arith.cmpi sge, %59, %60 : vector<1x256xi32>
    %c-1_i32_25 = arith.constant -1 : i32
    %62 = vector.broadcast %c-1_i32_25 : i32 to vector<1x256xi32>
    %63 = arith.addi %3, %62 : vector<1x256xi32>
    %c16_i32_26 = arith.constant 16 : i32
    %64 = vector.broadcast %c16_i32_26 : i32 to vector<1x256xi32>
    %65 = arith.cmpi slt, %63, %64 : vector<1x256xi32>
    %66 = arith.andi %61, %65 : vector<1x256xi1>
    %c0_i32_27 = arith.constant 0 : i32
    %67 = vector.broadcast %c0_i32_27 : i32 to vector<1x256xi32>
    %68 = arith.addi %3, %67 : vector<1x256xi32>
    %c0_i32_28 = arith.constant 0 : i32
    %69 = vector.broadcast %c0_i32_28 : i32 to vector<1x256xi32>
    %70 = arith.cmpi sge, %68, %69 : vector<1x256xi32>
    %c0_i32_29 = arith.constant 0 : i32
    %71 = vector.broadcast %c0_i32_29 : i32 to vector<1x256xi32>
    %72 = arith.addi %3, %71 : vector<1x256xi32>
    %c16_i32_30 = arith.constant 16 : i32
    %73 = vector.broadcast %c16_i32_30 : i32 to vector<1x256xi32>
    %74 = arith.cmpi slt, %72, %73 : vector<1x256xi32>
    %75 = arith.andi %70, %74 : vector<1x256xi1>
    %c1_i32_31 = arith.constant 1 : i32
    %76 = vector.broadcast %c1_i32_31 : i32 to vector<1x256xi32>
    %77 = arith.addi %3, %76 : vector<1x256xi32>
    %c0_i32_32 = arith.constant 0 : i32
    %78 = vector.broadcast %c0_i32_32 : i32 to vector<1x256xi32>
    %79 = arith.cmpi sge, %77, %78 : vector<1x256xi32>
    %c1_i32_33 = arith.constant 1 : i32
    %80 = vector.broadcast %c1_i32_33 : i32 to vector<1x256xi32>
    %81 = arith.addi %3, %80 : vector<1x256xi32>
    %c16_i32_34 = arith.constant 16 : i32
    %82 = vector.broadcast %c16_i32_34 : i32 to vector<1x256xi32>
    %83 = arith.cmpi slt, %81, %82 : vector<1x256xi32>
    %84 = arith.andi %79, %83 : vector<1x256xi1>
    %c2_i32_35 = arith.constant 2 : i32
    %85 = vector.broadcast %c2_i32_35 : i32 to vector<1x256xi32>
    %86 = arith.addi %3, %85 : vector<1x256xi32>
    %c0_i32_36 = arith.constant 0 : i32
    %87 = vector.broadcast %c0_i32_36 : i32 to vector<1x256xi32>
    %88 = arith.cmpi sge, %86, %87 : vector<1x256xi32>
    %c2_i32_37 = arith.constant 2 : i32
    %89 = vector.broadcast %c2_i32_37 : i32 to vector<1x256xi32>
    %90 = arith.addi %3, %89 : vector<1x256xi32>
    %c16_i32_38 = arith.constant 16 : i32
    %91 = vector.broadcast %c16_i32_38 : i32 to vector<1x256xi32>
    %92 = arith.cmpi slt, %90, %91 : vector<1x256xi32>
    %93 = arith.andi %88, %92 : vector<1x256xi1>
    %c34_i32 = arith.constant 34 : i32
    %94 = tpu.dynamic_rotate %1 by %c34_i32 dim 1 : vector<8x256xf32>, i32 -> vector<8x256xf32>
    %95 = arith.andi %12, %57 : vector<1x256xi1>
    %cst = arith.constant 0.000000e+00 : f32
    %96 = vector.shape_cast %95 : vector<1x256xi1> to vector<1x256xi1>
    %97 = vector.broadcast %96 : vector<1x256xi1> to vector<8x256xi1>
    %98 = vector.broadcast %cst : f32 to vector<8x256xf32>
    %99 = arith.select %97, %94, %98 : vector<8x256xi1>, vector<8x256xf32>
    %c33_i32 = arith.constant 33 : i32
    %100 = tpu.dynamic_rotate %1 by %c33_i32 dim 1 : vector<8x256xf32>, i32 -> vector<8x256xf32>
    %101 = arith.andi %12, %66 : vector<1x256xi1>
    %cst_39 = arith.constant 0.000000e+00 : f32
    %102 = vector.shape_cast %101 : vector<1x256xi1> to vector<1x256xi1>
    %103 = vector.broadcast %102 : vector<1x256xi1> to vector<8x256xi1>
    %104 = vector.broadcast %cst_39 : f32 to vector<8x256xf32>
    %105 = arith.select %103, %100, %104 : vector<8x256xi1>, vector<8x256xf32>
    %c32_i32 = arith.constant 32 : i32
    %106 = tpu.dynamic_rotate %1 by %c32_i32 dim 1 : vector<8x256xf32>, i32 -> vector<8x256xf32>
    %107 = arith.andi %12, %75 : vector<1x256xi1>
    %cst_40 = arith.constant 0.000000e+00 : f32
    %108 = vector.shape_cast %107 : vector<1x256xi1> to vector<1x256xi1>
    %109 = vector.broadcast %108 : vector<1x256xi1> to vector<8x256xi1>
    %110 = vector.broadcast %cst_40 : f32 to vector<8x256xf32>
    %111 = arith.select %109, %106, %110 : vector<8x256xi1>, vector<8x256xf32>
    %c31_i32 = arith.constant 31 : i32
    %112 = tpu.dynamic_rotate %1 by %c31_i32 dim 1 : vector<8x256xf32>, i32 -> vector<8x256xf32>
    %113 = arith.andi %12, %84 : vector<1x256xi1>
    %cst_41 = arith.constant 0.000000e+00 : f32
    %114 = vector.shape_cast %113 : vector<1x256xi1> to vector<1x256xi1>
    %115 = vector.broadcast %114 : vector<1x256xi1> to vector<8x256xi1>
    %116 = vector.broadcast %cst_41 : f32 to vector<8x256xf32>
    %117 = arith.select %115, %112, %116 : vector<8x256xi1>, vector<8x256xf32>
    %c30_i32 = arith.constant 30 : i32
    %118 = tpu.dynamic_rotate %1 by %c30_i32 dim 1 : vector<8x256xf32>, i32 -> vector<8x256xf32>
    %119 = arith.andi %12, %93 : vector<1x256xi1>
    %cst_42 = arith.constant 0.000000e+00 : f32
    %120 = vector.shape_cast %119 : vector<1x256xi1> to vector<1x256xi1>
    %121 = vector.broadcast %120 : vector<1x256xi1> to vector<8x256xi1>
    %122 = vector.broadcast %cst_42 : f32 to vector<8x256xf32>
    %123 = arith.select %121, %118, %122 : vector<8x256xi1>, vector<8x256xf32>
    %c18_i32 = arith.constant 18 : i32
    %124 = tpu.dynamic_rotate %1 by %c18_i32 dim 1 : vector<8x256xf32>, i32 -> vector<8x256xf32>
    %125 = arith.andi %21, %57 : vector<1x256xi1>
    %cst_43 = arith.constant 0.000000e+00 : f32
    %126 = vector.shape_cast %125 : vector<1x256xi1> to vector<1x256xi1>
    %127 = vector.broadcast %126 : vector<1x256xi1> to vector<8x256xi1>
    %128 = vector.broadcast %cst_43 : f32 to vector<8x256xf32>
    %129 = arith.select %127, %124, %128 : vector<8x256xi1>, vector<8x256xf32>
    %c17_i32 = arith.constant 17 : i32
    %130 = tpu.dynamic_rotate %1 by %c17_i32 dim 1 : vector<8x256xf32>, i32 -> vector<8x256xf32>
    %131 = arith.andi %21, %66 : vector<1x256xi1>
    %cst_44 = arith.constant 0.000000e+00 : f32
    %132 = vector.shape_cast %131 : vector<1x256xi1> to vector<1x256xi1>
    %133 = vector.broadcast %132 : vector<1x256xi1> to vector<8x256xi1>
    %134 = vector.broadcast %cst_44 : f32 to vector<8x256xf32>
    %135 = arith.select %133, %130, %134 : vector<8x256xi1>, vector<8x256xf32>
    %c16_i32_45 = arith.constant 16 : i32
    %136 = tpu.dynamic_rotate %1 by %c16_i32_45 dim 1 : vector<8x256xf32>, i32 -> vector<8x256xf32>
    %137 = arith.andi %21, %75 : vector<1x256xi1>
    %cst_46 = arith.constant 0.000000e+00 : f32
    %138 = vector.shape_cast %137 : vector<1x256xi1> to vector<1x256xi1>
    %139 = vector.broadcast %138 : vector<1x256xi1> to vector<8x256xi1>
    %140 = vector.broadcast %cst_46 : f32 to vector<8x256xf32>
    %141 = arith.select %139, %136, %140 : vector<8x256xi1>, vector<8x256xf32>
    %c15_i32 = arith.constant 15 : i32
    %142 = tpu.dynamic_rotate %1 by %c15_i32 dim 1 : vector<8x256xf32>, i32 -> vector<8x256xf32>
    %143 = arith.andi %21, %84 : vector<1x256xi1>
    %cst_47 = arith.constant 0.000000e+00 : f32
    %144 = vector.shape_cast %143 : vector<1x256xi1> to vector<1x256xi1>
    %145 = vector.broadcast %144 : vector<1x256xi1> to vector<8x256xi1>
    %146 = vector.broadcast %cst_47 : f32 to vector<8x256xf32>
    %147 = arith.select %145, %142, %146 : vector<8x256xi1>, vector<8x256xf32>
    %c14_i32 = arith.constant 14 : i32
    %148 = tpu.dynamic_rotate %1 by %c14_i32 dim 1 : vector<8x256xf32>, i32 -> vector<8x256xf32>
    %149 = arith.andi %21, %93 : vector<1x256xi1>
    %cst_48 = arith.constant 0.000000e+00 : f32
    %150 = vector.shape_cast %149 : vector<1x256xi1> to vector<1x256xi1>
    %151 = vector.broadcast %150 : vector<1x256xi1> to vector<8x256xi1>
    %152 = vector.broadcast %cst_48 : f32 to vector<8x256xf32>
    %153 = arith.select %151, %148, %152 : vector<8x256xi1>, vector<8x256xf32>
    %c2_i32_49 = arith.constant 2 : i32
    %154 = tpu.dynamic_rotate %1 by %c2_i32_49 dim 1 : vector<8x256xf32>, i32 -> vector<8x256xf32>
    %155 = arith.andi %30, %57 : vector<1x256xi1>
    %cst_50 = arith.constant 0.000000e+00 : f32
    %156 = vector.shape_cast %155 : vector<1x256xi1> to vector<1x256xi1>
    %157 = vector.broadcast %156 : vector<1x256xi1> to vector<8x256xi1>
    %158 = vector.broadcast %cst_50 : f32 to vector<8x256xf32>
    %159 = arith.select %157, %154, %158 : vector<8x256xi1>, vector<8x256xf32>
    %c1_i32_51 = arith.constant 1 : i32
    %160 = tpu.dynamic_rotate %1 by %c1_i32_51 dim 1 : vector<8x256xf32>, i32 -> vector<8x256xf32>
    %161 = arith.andi %30, %66 : vector<1x256xi1>
    %cst_52 = arith.constant 0.000000e+00 : f32
    %162 = vector.shape_cast %161 : vector<1x256xi1> to vector<1x256xi1>
    %163 = vector.broadcast %162 : vector<1x256xi1> to vector<8x256xi1>
    %164 = vector.broadcast %cst_52 : f32 to vector<8x256xf32>
    %165 = arith.select %163, %160, %164 : vector<8x256xi1>, vector<8x256xf32>
    %c255_i32 = arith.constant 255 : i32
    %166 = tpu.dynamic_rotate %1 by %c255_i32 dim 1 : vector<8x256xf32>, i32 -> vector<8x256xf32>
    %167 = arith.andi %30, %84 : vector<1x256xi1>
    %cst_53 = arith.constant 0.000000e+00 : f32
    %168 = vector.shape_cast %167 : vector<1x256xi1> to vector<1x256xi1>
    %169 = vector.broadcast %168 : vector<1x256xi1> to vector<8x256xi1>
    %170 = vector.broadcast %cst_53 : f32 to vector<8x256xf32>
    %171 = arith.select %169, %166, %170 : vector<8x256xi1>, vector<8x256xf32>
    %c254_i32 = arith.constant 254 : i32
    %172 = tpu.dynamic_rotate %1 by %c254_i32 dim 1 : vector<8x256xf32>, i32 -> vector<8x256xf32>
    %173 = arith.andi %30, %93 : vector<1x256xi1>
    %cst_54 = arith.constant 0.000000e+00 : f32
    %174 = vector.shape_cast %173 : vector<1x256xi1> to vector<1x256xi1>
    %175 = vector.broadcast %174 : vector<1x256xi1> to vector<8x256xi1>
    %176 = vector.broadcast %cst_54 : f32 to vector<8x256xf32>
    %177 = arith.select %175, %172, %176 : vector<8x256xi1>, vector<8x256xf32>
    %c242_i32 = arith.constant 242 : i32
    %178 = tpu.dynamic_rotate %1 by %c242_i32 dim 1 : vector<8x256xf32>, i32 -> vector<8x256xf32>
    %179 = arith.andi %39, %57 : vector<1x256xi1>
    %cst_55 = arith.constant 0.000000e+00 : f32
    %180 = vector.shape_cast %179 : vector<1x256xi1> to vector<1x256xi1>
    %181 = vector.broadcast %180 : vector<1x256xi1> to vector<8x256xi1>
    %182 = vector.broadcast %cst_55 : f32 to vector<8x256xf32>
    %183 = arith.select %181, %178, %182 : vector<8x256xi1>, vector<8x256xf32>
    %c241_i32 = arith.constant 241 : i32
    %184 = tpu.dynamic_rotate %1 by %c241_i32 dim 1 : vector<8x256xf32>, i32 -> vector<8x256xf32>
    %185 = arith.andi %39, %66 : vector<1x256xi1>
    %cst_56 = arith.constant 0.000000e+00 : f32
    %186 = vector.shape_cast %185 : vector<1x256xi1> to vector<1x256xi1>
    %187 = vector.broadcast %186 : vector<1x256xi1> to vector<8x256xi1>
    %188 = vector.broadcast %cst_56 : f32 to vector<8x256xf32>
    %189 = arith.select %187, %184, %188 : vector<8x256xi1>, vector<8x256xf32>
    %c240_i32 = arith.constant 240 : i32
    %190 = tpu.dynamic_rotate %1 by %c240_i32 dim 1 : vector<8x256xf32>, i32 -> vector<8x256xf32>
    %191 = arith.andi %39, %75 : vector<1x256xi1>
    %cst_57 = arith.constant 0.000000e+00 : f32
    %192 = vector.shape_cast %191 : vector<1x256xi1> to vector<1x256xi1>
    %193 = vector.broadcast %192 : vector<1x256xi1> to vector<8x256xi1>
    %194 = vector.broadcast %cst_57 : f32 to vector<8x256xf32>
    %195 = arith.select %193, %190, %194 : vector<8x256xi1>, vector<8x256xf32>
    %c239_i32 = arith.constant 239 : i32
    %196 = tpu.dynamic_rotate %1 by %c239_i32 dim 1 : vector<8x256xf32>, i32 -> vector<8x256xf32>
    %197 = arith.andi %39, %84 : vector<1x256xi1>
    %cst_58 = arith.constant 0.000000e+00 : f32
    %198 = vector.shape_cast %197 : vector<1x256xi1> to vector<1x256xi1>
    %199 = vector.broadcast %198 : vector<1x256xi1> to vector<8x256xi1>
    %200 = vector.broadcast %cst_58 : f32 to vector<8x256xf32>
    %201 = arith.select %199, %196, %200 : vector<8x256xi1>, vector<8x256xf32>
    %c238_i32 = arith.constant 238 : i32
    %202 = tpu.dynamic_rotate %1 by %c238_i32 dim 1 : vector<8x256xf32>, i32 -> vector<8x256xf32>
    %203 = arith.andi %39, %93 : vector<1x256xi1>
    %cst_59 = arith.constant 0.000000e+00 : f32
    %204 = vector.shape_cast %203 : vector<1x256xi1> to vector<1x256xi1>
    %205 = vector.broadcast %204 : vector<1x256xi1> to vector<8x256xi1>
    %206 = vector.broadcast %cst_59 : f32 to vector<8x256xf32>
    %207 = arith.select %205, %202, %206 : vector<8x256xi1>, vector<8x256xf32>
    %c226_i32 = arith.constant 226 : i32
    %208 = tpu.dynamic_rotate %1 by %c226_i32 dim 1 : vector<8x256xf32>, i32 -> vector<8x256xf32>
    %209 = arith.andi %48, %57 : vector<1x256xi1>
    %cst_60 = arith.constant 0.000000e+00 : f32
    %210 = vector.shape_cast %209 : vector<1x256xi1> to vector<1x256xi1>
    %211 = vector.broadcast %210 : vector<1x256xi1> to vector<8x256xi1>
    %212 = vector.broadcast %cst_60 : f32 to vector<8x256xf32>
    %213 = arith.select %211, %208, %212 : vector<8x256xi1>, vector<8x256xf32>
    %c225_i32 = arith.constant 225 : i32
    %214 = tpu.dynamic_rotate %1 by %c225_i32 dim 1 : vector<8x256xf32>, i32 -> vector<8x256xf32>
    %215 = arith.andi %48, %66 : vector<1x256xi1>
    %cst_61 = arith.constant 0.000000e+00 : f32
    %216 = vector.shape_cast %215 : vector<1x256xi1> to vector<1x256xi1>
    %217 = vector.broadcast %216 : vector<1x256xi1> to vector<8x256xi1>
    %218 = vector.broadcast %cst_61 : f32 to vector<8x256xf32>
    %219 = arith.select %217, %214, %218 : vector<8x256xi1>, vector<8x256xf32>
    %c224_i32 = arith.constant 224 : i32
    %220 = tpu.dynamic_rotate %1 by %c224_i32 dim 1 : vector<8x256xf32>, i32 -> vector<8x256xf32>
    %221 = arith.andi %48, %75 : vector<1x256xi1>
    %cst_62 = arith.constant 0.000000e+00 : f32
    %222 = vector.shape_cast %221 : vector<1x256xi1> to vector<1x256xi1>
    %223 = vector.broadcast %222 : vector<1x256xi1> to vector<8x256xi1>
    %224 = vector.broadcast %cst_62 : f32 to vector<8x256xf32>
    %225 = arith.select %223, %220, %224 : vector<8x256xi1>, vector<8x256xf32>
    %c223_i32 = arith.constant 223 : i32
    %226 = tpu.dynamic_rotate %1 by %c223_i32 dim 1 : vector<8x256xf32>, i32 -> vector<8x256xf32>
    %227 = arith.andi %48, %84 : vector<1x256xi1>
    %cst_63 = arith.constant 0.000000e+00 : f32
    %228 = vector.shape_cast %227 : vector<1x256xi1> to vector<1x256xi1>
    %229 = vector.broadcast %228 : vector<1x256xi1> to vector<8x256xi1>
    %230 = vector.broadcast %cst_63 : f32 to vector<8x256xf32>
    %231 = arith.select %229, %226, %230 : vector<8x256xi1>, vector<8x256xf32>
    %c222_i32 = arith.constant 222 : i32
    %232 = tpu.dynamic_rotate %1 by %c222_i32 dim 1 : vector<8x256xf32>, i32 -> vector<8x256xf32>
    %233 = arith.andi %48, %93 : vector<1x256xi1>
    %cst_64 = arith.constant 0.000000e+00 : f32
    %234 = vector.shape_cast %233 : vector<1x256xi1> to vector<1x256xi1>
    %235 = vector.broadcast %234 : vector<1x256xi1> to vector<8x256xi1>
    %236 = vector.broadcast %cst_64 : f32 to vector<8x256xf32>
    %237 = arith.select %235, %232, %236 : vector<8x256xi1>, vector<8x256xf32>
    %238 = tpu.concatenate %99, %105, %111, %117, %123, %129, %135, %141, %147, %153, %159, %165, %1, %171, %177, %183 in 0 : vector<8x256xf32>, vector<8x256xf32>, vector<8x256xf32>, vector<8x256xf32>, vector<8x256xf32>, vector<8x256xf32>, vector<8x256xf32>, vector<8x256xf32>, vector<8x256xf32>, vector<8x256xf32>, vector<8x256xf32>, vector<8x256xf32>, vector<8x256xf32>, vector<8x256xf32>, vector<8x256xf32>, vector<8x256xf32> -> vector<128x256xf32>
    %239 = tpu.concatenate %189, %195, %201, %207, %213, %219, %225, %231, %237 in 0 : vector<8x256xf32>, vector<8x256xf32>, vector<8x256xf32>, vector<8x256xf32>, vector<8x256xf32>, vector<8x256xf32>, vector<8x256xf32>, vector<8x256xf32>, vector<8x256xf32> -> vector<72x256xf32>
    %240 = tpu.concatenate %238, %239 in 0 : vector<128x256xf32>, vector<72x256xf32> -> vector<200x256xf32>
    %c0_65 = arith.constant 0 : index
    %c0_66 = arith.constant 0 : index
    %241 = vector.load %arg2[%c0_65, %c0_66] : memref<24x200xf32, #tpu.memory_space<vmem>>, vector<24x200xf32>
    %cst_67 = arith.constant dense<0.000000e+00> : vector<24x256xf32>
    %242 = tpu.matmul %241, %240, %cst_67 {dimension_numbers = #tpu.dot_dimension_numbers<[1], [0], [0], [1], [0, 0, 1, 1], [], []>} : vector<24x200xf32>, vector<200x256xf32>, vector<24x256xf32> -> vector<24x256xf32>
    %cst_68 = arith.constant 0.000000e+00 : f32
    %243 = vector.broadcast %cst_68 : f32 to vector<24x256xf32>
    %244 = arith.maximumf %242, %243 : vector<24x256xf32>
    %245 = arith.andi %21, %66 : vector<1x256xi1>
    %246 = arith.maximumf %1, %130 : vector<8x256xf32>
    %247 = vector.shape_cast %245 : vector<1x256xi1> to vector<1x256xi1>
    %248 = vector.broadcast %247 : vector<1x256xi1> to vector<8x256xi1>
    %249 = arith.select %248, %246, %1 : vector<8x256xi1>, vector<8x256xf32>
    %250 = arith.andi %21, %75 : vector<1x256xi1>
    %251 = arith.maximumf %249, %136 : vector<8x256xf32>
    %252 = vector.shape_cast %250 : vector<1x256xi1> to vector<1x256xi1>
    %253 = vector.broadcast %252 : vector<1x256xi1> to vector<8x256xi1>
    %254 = arith.select %253, %251, %249 : vector<8x256xi1>, vector<8x256xf32>
    %255 = arith.andi %21, %84 : vector<1x256xi1>
    %256 = arith.maximumf %254, %142 : vector<8x256xf32>
    %257 = vector.shape_cast %255 : vector<1x256xi1> to vector<1x256xi1>
    %258 = vector.broadcast %257 : vector<1x256xi1> to vector<8x256xi1>
    %259 = arith.select %258, %256, %254 : vector<8x256xi1>, vector<8x256xf32>
    %260 = arith.andi %30, %66 : vector<1x256xi1>
    %261 = arith.maximumf %259, %160 : vector<8x256xf32>
    %262 = vector.shape_cast %260 : vector<1x256xi1> to vector<1x256xi1>
    %263 = vector.broadcast %262 : vector<1x256xi1> to vector<8x256xi1>
    %264 = arith.select %263, %261, %259 : vector<8x256xi1>, vector<8x256xf32>
    %265 = arith.andi %30, %84 : vector<1x256xi1>
    %266 = arith.maximumf %264, %166 : vector<8x256xf32>
    %267 = vector.shape_cast %265 : vector<1x256xi1> to vector<1x256xi1>
    %268 = vector.broadcast %267 : vector<1x256xi1> to vector<8x256xi1>
    %269 = arith.select %268, %266, %264 : vector<8x256xi1>, vector<8x256xf32>
    %270 = arith.andi %39, %66 : vector<1x256xi1>
    %271 = arith.maximumf %269, %184 : vector<8x256xf32>
    %272 = vector.shape_cast %270 : vector<1x256xi1> to vector<1x256xi1>
    %273 = vector.broadcast %272 : vector<1x256xi1> to vector<8x256xi1>
    %274 = arith.select %273, %271, %269 : vector<8x256xi1>, vector<8x256xf32>
    %275 = arith.andi %39, %75 : vector<1x256xi1>
    %276 = arith.maximumf %274, %190 : vector<8x256xf32>
    %277 = vector.shape_cast %275 : vector<1x256xi1> to vector<1x256xi1>
    %278 = vector.broadcast %277 : vector<1x256xi1> to vector<8x256xi1>
    %279 = arith.select %278, %276, %274 : vector<8x256xi1>, vector<8x256xf32>
    %280 = arith.andi %39, %84 : vector<1x256xi1>
    %281 = arith.maximumf %279, %196 : vector<8x256xf32>
    %282 = vector.shape_cast %280 : vector<1x256xi1> to vector<1x256xi1>
    %283 = vector.broadcast %282 : vector<1x256xi1> to vector<8x256xi1>
    %284 = arith.select %283, %281, %279 : vector<8x256xi1>, vector<8x256xf32>
    %c0_69 = arith.constant 0 : index
    %c0_70 = arith.constant 0 : index
    %c0_71 = arith.constant 0 : index
    %285 = vector.load %arg4[%c0_69, %c0_70, %c0_71] : memref<1x28x256xf32, #tpu.memory_space<vmem>>, vector<1x24x256xf32>
    %286 = vector.shape_cast %285 : vector<1x24x256xf32> to vector<24x256xf32>
    %287 = vector.shape_cast %244 : vector<24x256xf32> to vector<1x24x256xf32>
    tpu.vector_store %arg4[%c0_69, %c0_70, %c0_71], %287 {strides = array<i32>} : memref<1x28x256xf32, #tpu.memory_space<vmem>>, vector<1x24x256xf32>,
    %288 = vector.extract_strided_slice %284 {offsets = [0, 0], sizes = [4, 256], strides = [1, 1]} : vector<8x256xf32> to vector<4x256xf32>
    %c0_72 = arith.constant 0 : index
    %c24 = arith.constant 24 : index
    %c0_73 = arith.constant 0 : index
    %289 = vector.load %arg4[%c0_72, %c24, %c0_73] : memref<1x28x256xf32, #tpu.memory_space<vmem>>, vector<1x4x256xf32>
    %290 = vector.shape_cast %289 : vector<1x4x256xf32> to vector<4x256xf32>
    %291 = vector.shape_cast %288 : vector<4x256xf32> to vector<1x4x256xf32>
    tpu.vector_store %arg4[%c0_72, %c24, %c0_73], %291 {strides = array<i32>} : memref<1x28x256xf32, #tpu.memory_space<vmem>>, vector<1x4x256xf32>,
    return
  }
  func.func @transform_0(%arg0: i32) -> (i32, i32, i32) {
    %c0_i32 = arith.constant 0 : i32
    %c0_i32_0 = arith.constant 0 : i32
    %c0_i32_1 = arith.constant 0 : i32
    return %arg0, %c0_i32, %c0_i32_0 : i32, i32, i32
  }
  func.func @transform_1(%arg0: i32) -> (i32, i32) {
    %c0_i32 = arith.constant 0 : i32
    %c0_i32_0 = arith.constant 0 : i32
    %c0_i32_1 = arith.constant 0 : i32
    return %c0_i32, %c0_i32_0 : i32, i32
  }
  func.func @transform_2(%arg0: i32) -> (i32, i32) {
    %c0_i32 = arith.constant 0 : i32
    %c0_i32_0 = arith.constant 0 : i32
    %c0_i32_1 = arith.constant 0 : i32
    return %c0_i32, %c0_i32_0 : i32, i32
  }
  func.func @transform_3(%arg0: i32) -> (i32, i32, i32) {
    %c0_i32 = arith.constant 0 : i32
    %c0_i32_0 = arith.constant 0 : i32
    %c0_i32_1 = arith.constant 0 : i32
    return %arg0, %c0_i32, %c0_i32_0 : i32, i32, i32
  }
}

</mosaic_0001>

<llo_original>
// kernel: inception_block_pallas.1
$region0: #{inception_block_pallas.1}
  #allocation0 [shape = 'u32[]', space=smem, size = 0x4, offset = 0x4, fixed_abs, tag = 'smem constant byte address 0x4 - core index']
  #allocation1 [shape = 'u32[72,128]{1,0:T(1,128)}', space=vmem, size = 0x9000, scoped, tag = 'internal scratch']
  %s0 = inlined_call_operand.vmem [shape: f32[2,8,256], index: 0, kind: input, shape index: {}]
  %s1 = inlined_call_operand.vmem [shape: f32[24,200], index: 1, kind: input, shape index: {}]
  %s2 = inlined_call_operand.vmem [shape: s32[2,256], index: 2, kind: input, shape index: {}]
  %s3 = inlined_call_operand.vmem [shape: f32[2,28,256], index: 3, kind: output, shape index: {}]
  %s4 = sld [smem:[#allocation0]]
  $region45: #{inception_block_pallas.1} parent=0
    _
  %s6 = ssub.s32 1, %s4
  %s7 = scalar_select 0, %s6, %s4
  loop: start=0, step=1, limit=4
  $region2: #{inception_block_pallas.1} parent=0 // loop_pre_header
    _
  $region3: #{inception_block_pallas.1} parent=0 // loop_header
    %s9 = sphi 0, %s13
    %p10 = scmp.ge.s32.totalorder %s9, 4
    %s19 = sphi 0, %s21
    %s22 = sphi 0, %s19
    %s23 = sphi 0, %s22
    %s39 = sphi 0, %s23
    %s43 = sphi 0, %s43
    %s45 = sphi 0, %s43
    %s46 = sphi 0, %s45
    %s60 = sphi 0, %s46
    %s64 = sphi 0, %s64
    %s66 = sphi 0, %s64
    %s67 = sphi 0, %s66
    %s81 = sphi 0, %s67
    %s87 = sphi 0, %s89
    %s90 = sphi 0, %s87
    %s91 = sphi 0, %s90
    %s107 = sphi 0, %s91
  $region4: #{inception_block_pallas.1} parent=0 // loop_header_branch
    %12 = sbr.rel (%p10) target = $region8
  $region5: #{inception_block_pallas.1} parent=0 // loop_body
    %s14 = ssub.s32 %s9, 1
    %s15 = ssub.s32 %s9, 2
    %s16 = sadd.s32 %s9, 1
    %s17 = ssub.s32 %s9, %s16
    %p18 = scmp.eq.s32.totalorder %s17, 0
    %s20 = sadd.s32 %s19, 1
    %s21 = scalar_select %p18, %s19, %s20
    %p24 = pneg %p18
    %p25 = scmp.eq.s32.totalorder %s9, 1
    %p26 = por %p24, %p25
    %p27 = scmp.ne.s32.totalorder %s19, %s22
    %p28 = scmp.eq.s32.totalorder %s9, 0
    %p29 = por %p27, %p28
    %p30 = scmp.ne.s32.totalorder %s19, %s22
    %p31 = scmp.eq.s32.totalorder %s14, 1
    %p32 = por %p30, %p31
    %p33 = scmp.ne.s32.totalorder %s22, %s23
    %p34 = scmp.eq.s32.totalorder %s14, 0
    %p35 = por %p33, %p34
    %p36 = scmp.ne.s32.totalorder %s22, %s23
    %p37 = scmp.eq.s32.totalorder %s15, 1
    %p38 = por %p36, %p37
    %p40 = scmp.ne.s32.totalorder %s23, %s39
    %p41 = scmp.eq.s32.totalorder %s15, 0
    %p42 = por %p40, %p41
    %s44 = sadd.s32 %s43, 1
    %p47 = scmp.eq.s32.totalorder %s9, 1
    %p48 = scmp.ne.s32.totalorder %s43, %s45
    %p49 = scmp.eq.s32.totalorder %s9, 0
    %p50 = por %p48, %p49
    %p51 = scmp.ne.s32.totalorder %s43, %s45
    %p52 = scmp.eq.s32.totalorder %s14, 1
    %p53 = por %p51, %p52
    %p54 = scmp.ne.s32.totalorder %s45, %s46
    %p55 = scmp.eq.s32.totalorder %s14, 0
    %p56 = por %p54, %p55
    %p57 = scmp.ne.s32.totalorder %s45, %s46
    %p58 = scmp.eq.s32.totalorder %s15, 1
    %p59 = por %p57, %p58
    %p61 = scmp.ne.s32.totalorder %s46, %s60
    %p62 = scmp.eq.s32.totalorder %s15, 0
    %p63 = por %p61, %p62
    %s65 = sadd.s32 %s64, 1
    %p68 = scmp.eq.s32.totalorder %s9, 1
    %p69 = scmp.ne.s32.totalorder %s64, %s66
    %p70 = scmp.eq.s32.totalorder %s9, 0
    %p71 = por %p69, %p70
    %p72 = scmp.ne.s32.totalorder %s64, %s66
    %p73 = scmp.eq.s32.totalorder %s14, 1
    %p74 = por %p72, %p73
    %p75 = scmp.ne.s32.totalorder %s66, %s67
    %p76 = scmp.eq.s32.totalorder %s14, 0
    %p77 = por %p75, %p76
    %p78 = scmp.ne.s32.totalorder %s66, %s67
    %p79 = scmp.eq.s32.totalorder %s15, 1
    %p80 = por %p78, %p79
    %p82 = scmp.ne.s32.totalorder %s67, %s81
    %p83 = scmp.eq.s32.totalorder %s15, 0
    %p84 = por %p82, %p83
    %s85 = ssub.s32 %s9, %s16
    %p86 = scmp.eq.s32.totalorder %s85, 0
    %s88 = sadd.s32 %s87, 1
    %s89 = scalar_select %p86, %s87, %s88
    %p92 = pneg %p86
    %p93 = scmp.eq.s32.totalorder %s9, 1
    %p94 = por %p92, %p93
    %p95 = scmp.ne.s32.totalorder %s87, %s90
    %p96 = scmp.eq.s32.totalorder %s9, 0
    %p97 = por %p95, %p96
    %p98 = scmp.ne.s32.totalorder %s87, %s90
    %p99 = scmp.eq.s32.totalorder %s14, 1
    %p100 = por %p98, %p99
    %p101 = scmp.ne.s32.totalorder %s90, %s91
    %p102 = scmp.eq.s32.totalorder %s14, 0
    %p103 = por %p101, %p102
    %p104 = scmp.ne.s32.totalorder %s90, %s91
    %p105 = scmp.eq.s32.totalorder %s15, 1
    %p106 = por %p104, %p105
    %p108 = scmp.ne.s32.totalorder %s91, %s107
    %p109 = scmp.eq.s32.totalorder %s15, 0
    %p110 = por %p108, %p109
    %p111 = scmp.le.s32.totalorder 1, %s9
    %p112 = scmp.lt.s32.totalorder %s9, 3
    %p113 = pnand %p111, %p112
    %p114 = pneg %p113
    // Predicated region
    $region9: #{inception_block_pallas.1} parent=5 // pred_check
      _
    $region10: #{inception_block_pallas.1} parent=5 // pred_check_branch
      %116 = sbr.rel (%p113) target = $region12
    $region11: #{inception_block_pallas.1} parent=5 // pred_region
      %s117 = ssub.s32 %s9, 1
      // Predicated region
      $region13: #{inception_block_pallas.1} parent=11 // pred_check
        %p118 = pneg %p56
      $region14: #{inception_block_pallas.1} parent=11 // pred_check_branch
        %120 = sbr.rel (%p118) target = $region16
      $region15: #{inception_block_pallas.1} parent=11 // pred_region
        _
      $region16: #{inception_block_pallas.1} parent=11 // pred_fallthru
        _
      // Predicated region
      $region17: #{inception_block_pallas.1} parent=11 // pred_check
        %p121 = pneg %p77
      $region18: #{inception_block_pallas.1} parent=11 // pred_check_branch
        %123 = sbr.rel (%p121) target = $region20
      $region19: #{inception_block_pallas.1} parent=11 // pred_region
        _
      $region20: #{inception_block_pallas.1} parent=11 // pred_fallthru
        _
    $region12: #{inception_block_pallas.1} parent=5 // pred_fallthru
      _
    %p124 = scmp.lt.s32.totalorder %s9, 2
    // Predicated region
    $region21: #{inception_block_pallas.1} parent=5 // pred_check
      %p125 = pneg %p124
    $region22: #{inception_block_pallas.1} parent=5 // pred_check_branch
      %127 = sbr.rel (%p125) target = $region24
    $region23: #{inception_block_pallas.1} parent=5 // pred_region
      // Predicated region
      $region25: #{inception_block_pallas.1} parent=23 // pred_check
        %p128 = pneg %p29
      $region26: #{inception_block_pallas.1} parent=23 // pred_check_branch
        %130 = sbr.rel (%p128) target = $region28
      $region27: #{inception_block_pallas.1} parent=23 // pred_region
        %p131 = scmp.lt.s32.totalorder %s9, 1
        %s132 = scalar_select %p131, %s9, 1
        %s133 = smul.addr %s132, 2
        %s134 = smul.addr %s133, 8
        %s135 = scalar_lea.vmem %s0, %s134
      $region28: #{inception_block_pallas.1} parent=23 // pred_fallthru
        _
    $region24: #{inception_block_pallas.1} parent=5 // pred_fallthru
      _
    %p136 = scmp.le.s32.totalorder 1, %s9
    %p137 = scmp.lt.s32.totalorder %s9, 3
    %p138 = pnand %p136, %p137
    %p139 = pneg %p138
    // Predicated region
    $region29: #{inception_block_pallas.1} parent=5 // pred_check
      _
    $region30: #{inception_block_pallas.1} parent=5 // pred_check_branch
      %141 = sbr.rel (%p138) target = $region32
    $region31: #{inception_block_pallas.1} parent=5 // pred_region
      %s142 = ssub.s32 %s9, 1
      %p143 = scmp.lt.s32.totalorder %s14, 1
      %s144 = scalar_select %p143, %s14, 1
      %s145 = smul.addr %s144, 2
      %s146 = smul.addr %s145, 8
      %s147 = scalar_lea.vmem %s0, %s146
      %p148 = pneg %p35
      %p149 = pneg %p32
      %p150 = pneg %p56
      %p151 = pneg %p53
      %p152 = pneg %p77
      %p153 = pneg %p74
      %p154 = pneg %p103
      %p155 = pneg %p100
      %p156 = scmp.lt.s32.totalorder %s14, 1
      %s157 = scalar_select %p156, %s14, 1
      %s158 = smul.addr %s157, 8
      %s159 = smul.addr %s158, 8
      %s160 = scalar_lea.vmem %s3, %s159
      %p161 = scmp.lt.s32.totalorder %s14, 1
      %s162 = scalar_select %p161, %s14, 1
      %s163 = smul.addr %s162, 2
      %s164 = smul.addr %s163, 8
      %s165 = scalar_lea.vmem %s0, %s164
      %p166 = scmp.lt.s32.totalorder %s14, 1
      %s167 = scalar_select %p166, %s14, 1
      %s168 = smul.addr %s167, 8
      %s169 = smul.addr %s168, 8
      %s170 = scalar_lea.vmem %s3, %s169
      %v171 = vld [vmem:[%s165] sm:$0xff]
      %v172 = vld [vmem:[%s165 + $0x8] sm:$0xff]
      %v173 = vld [vmem:[%s2] ss:$2 sm:$0x3]
      %s174 = scalar_lea.vmem %s2, 1
      %v175 = vld [vmem:[%s174] ss:$2 sm:$0x3]
      %v176 = vadd.s32 %v173, 4294967294
      %vm177 = vcmp.ge.s32.totalorder %v176, 0
      %vm178 = vcmp.lt.s32.totalorder %v176, 16
      %vm179 = vmand %vm177, %vm178
      %v180 = vadd.s32 %v173, 4294967295
      %vm181 = vcmp.ge.s32.totalorder %v180, 0
      %vm182 = vcmp.lt.s32.totalorder %v180, 16
      %vm183 = vmand %vm181, %vm182
      %vm184 = vcmp.ge.s32.totalorder %v173, 0
      %vm185 = vcmp.lt.s32.totalorder %v173, 16
      %vm186 = vmand %vm184, %vm185
      %v187 = vadd.s32 %v173, 1
      %vm188 = vcmp.ge.s32.totalorder %v187, 0
      %vm189 = vcmp.lt.s32.totalorder %v187, 16
      %vm190 = vmand %vm188, %vm189
      %v191 = vadd.s32 %v173, 2
      %vm192 = vcmp.ge.s32.totalorder %v191, 0
      %vm193 = vcmp.lt.s32.totalorder %v191, 16
      %vm194 = vmand %vm192, %vm193
      %v195 = vadd.s32 %v175, 4294967294
      %vm196 = vcmp.ge.s32.totalorder %v195, 0
      %vm197 = vcmp.lt.s32.totalorder %v195, 16
      %vm198 = vmand %vm196, %vm197
      %v199 = vadd.s32 %v175, 4294967295
      %vm200 = vcmp.ge.s32.totalorder %v199, 0
      %vm201 = vcmp.lt.s32.totalorder %v199, 16
      %vm202 = vmand %vm200, %vm201
      %vm203 = vcmp.ge.s32.totalorder %v175, 0
      %vm204 = vcmp.lt.s32.totalorder %v175, 16
      %vm205 = vmand %vm203, %vm204
      %v206 = vadd.s32 %v175, 1
      %vm207 = vcmp.ge.s32.totalorder %v206, 0
      %vm208 = vcmp.lt.s32.totalorder %v206, 16
      %vm209 = vmand %vm207, %vm208
      %v210 = vadd.s32 %v175, 2
      %vm211 = vcmp.ge.s32.totalorder %v210, 0
      %vm212 = vcmp.lt.s32.totalorder %v210, 16
      %vm213 = vmand %vm211, %vm212
      %214 = vrot.lane.b32.xlu0 %v171, 34
      %v215 = vpop.permute.xlu0 %214
      %216 = vrot.lane.b32.xlu0 %v172, 34
      %v217 = vpop.permute.xlu0 %216
      %v218 = vlaneseq
      %v219 = vand.u32 %v218, 127
      %vm220 = vcmp.lt.s32.totalorder %v219, 34
      %v221 = vsel %vm220, %v215, %v217
      %v222 = vsel %vm220, %v217, %v215
      %vm223 = vmand %vm179, %vm198
      %v224 = vsel %vm223, 1, 0
      %v225 = vperm.slane %v224, 0
      %v226 = vperm.slane %v224, 1
      %vm227 = vcmp.eq.s32.totalorder %v225, 1
      %vm228 = vcmp.eq.s32.totalorder %v226, 1
      %v229 = vsel %vm227, %v222, 0.0
      %v230 = vsel %vm228, %v221, 0.0
      %231 = vrot.lane.b32.xlu0 %v171, 33
      %v232 = vpop.permute.xlu0 %231
      %233 = vrot.lane.b32.xlu0 %v172, 33
      %v234 = vpop.permute.xlu0 %233
      %vm235 = vcmp.lt.s32.totalorder %v219, 33
      %v236 = vsel %vm235, %v232, %v234
      %v237 = vsel %vm235, %v234, %v232
      %vm238 = vmand %vm179, %vm202
      %v239 = vsel %vm238, 1, 0
      %v240 = vperm.slane %v239, 0
      %v241 = vperm.slane %v239, 1
      %vm242 = vcmp.eq.s32.totalorder %v240, 1
      %vm243 = vcmp.eq.s32.totalorder %v241, 1
      %v244 = vsel %vm242, %v237, 0.0
      %v245 = vsel %vm243, %v236, 0.0
      %246 = vrot.lane.b32.xlu0 %v171, 32
      %v247 = vpop.permute.xlu0 %246
      %248 = vrot.lane.b32.xlu0 %v172, 32
      %v249 = vpop.permute.xlu0 %248
      %vm250 = vcmp.lt.s32.totalorder %v219, 32
      %v251 = vsel %vm250, %v247, %v249
      %v252 = vsel %vm250, %v249, %v247
      %vm253 = vmand %vm179, %vm205
      %v254 = vsel %vm253, 1, 0
      %v255 = vperm.slane %v254, 0
      %v256 = vperm.slane %v254, 1
      %vm257 = vcmp.eq.s32.totalorder %v255, 1
      %vm258 = vcmp.eq.s32.totalorder %v256, 1
      %v259 = vsel %vm257, %v252, 0.0
      %v260 = vsel %vm258, %v251, 0.0
      %261 = vrot.lane.b32.xlu0 %v171, 31
      %v262 = vpop.permute.xlu0 %261
      %263 = vrot.lane.b32.xlu0 %v172, 31
      %v264 = vpop.permute.xlu0 %263
      %vm265 = vcmp.lt.s32.totalorder %v219, 31
      %v266 = vsel %vm265, %v262, %v264
      %v267 = vsel %vm265, %v264, %v262
      %vm268 = vmand %vm179, %vm209
      %v269 = vsel %vm268, 1, 0
      %v270 = vperm.slane %v269, 0
      %v271 = vperm.slane %v269, 1
      %vm272 = vcmp.eq.s32.totalorder %v270, 1
      %vm273 = vcmp.eq.s32.totalorder %v271, 1
      %v274 = vsel %vm272, %v267, 0.0
      %v275 = vsel %vm273, %v266, 0.0
      %276 = vrot.lane.b32.xlu0 %v171, 30
      %v277 = vpop.permute.xlu0 %276
      %278 = vrot.lane.b32.xlu0 %v172, 30
      %v279 = vpop.permute.xlu0 %278
      %vm280 = vcmp.lt.s32.totalorder %v219, 30
      %v281 = vsel %vm280, %v277, %v279
      %v282 = vsel %vm280, %v279, %v277
      %vm283 = vmand %vm179, %vm213
      %v284 = vsel %vm283, 1, 0
      %v285 = vperm.slane %v284, 0
      %v286 = vperm.slane %v284, 1
      %vm287 = vcmp.eq.s32.totalorder %v285, 1
      %vm288 = vcmp.eq.s32.totalorder %v286, 1
      %v289 = vsel %vm287, %v282, 0.0
      %v290 = vsel %vm288, %v281, 0.0
      %291 = vrot.lane.b32.xlu0 %v171, 18
      %v292 = vpop.permute.xlu0 %291
      %293 = vrot.lane.b32.xlu0 %v172, 18
      %v294 = vpop.permute.xlu0 %293
      %vm295 = vcmp.lt.s32.totalorder %v219, 18
      %v296 = vsel %vm295, %v292, %v294
      %v297 = vsel %vm295, %v294, %v292
      %vm298 = vmand %vm183, %vm198
      %v299 = vsel %vm298, 1, 0
      %v300 = vperm.slane %v299, 0
      %v301 = vperm.slane %v299, 1
      %vm302 = vcmp.eq.s32.totalorder %v300, 1
      %vm303 = vcmp.eq.s32.totalorder %v301, 1
      %v304 = vsel %vm302, %v297, 0.0
      %v305 = vsel %vm303, %v296, 0.0
      %306 = vrot.lane.b32.xlu0 %v171, 17
      %v307 = vpop.permute.xlu0 %306
      %308 = vrot.lane.b32.xlu0 %v172, 17
      %v309 = vpop.permute.xlu0 %308
      %vm310 = vcmp.lt.s32.totalorder %v219, 17
      %v311 = vsel %vm310, %v307, %v309
      %v312 = vsel %vm310, %v309, %v307
      %vm313 = vmand %vm183, %vm202
      %v314 = vsel %vm313, 1, 0
      %v315 = vperm.slane %v314, 0
      %v316 = vperm.slane %v314, 1
      %vm317 = vcmp.eq.s32.totalorder %v315, 1
      %vm318 = vcmp.eq.s32.totalorder %v316, 1
      %v319 = vsel %vm317, %v312, 0.0
      %v320 = vsel %vm318, %v311, 0.0
      %321 = vrot.lane.b32.xlu0 %v171, 16
      %v322 = vpop.permute.xlu0 %321
      %323 = vrot.lane.b32.xlu0 %v172, 16
      %v324 = vpop.permute.xlu0 %323
      %vm325 = vcmp.lt.s32.totalorder %v219, 16
      %v326 = vsel %vm325, %v322, %v324
      %v327 = vsel %vm325, %v324, %v322
      %vm328 = vmand %vm183, %vm205
      %v329 = vsel %vm328, 1, 0
      %v330 = vperm.slane %v329, 0
      %v331 = vperm.slane %v329, 1
      %vm332 = vcmp.eq.s32.totalorder %v330, 1
      %vm333 = vcmp.eq.s32.totalorder %v331, 1
      %v334 = vsel %vm332, %v327, 0.0
      %v335 = vsel %vm333, %v326, 0.0
      %336 = vrot.lane.b32.xlu0 %v171, 15
      %v337 = vpop.permute.xlu0 %336
      %338 = vrot.lane.b32.xlu0 %v172, 15
      %v339 = vpop.permute.xlu0 %338
      %vm340 = vcmp.lt.s32.totalorder %v219, 15
      %v341 = vsel %vm340, %v337, %v339
      %v342 = vsel %vm340, %v339, %v337
      %vm343 = vmand %vm183, %vm209
      %v344 = vsel %vm343, 1, 0
      %v345 = vperm.slane %v344, 0
      %v346 = vperm.slane %v344, 1
      %vm347 = vcmp.eq.s32.totalorder %v345, 1
      %vm348 = vcmp.eq.s32.totalorder %v346, 1
      %v349 = vsel %vm347, %v342, 0.0
      %v350 = vsel %vm348, %v341, 0.0
      %351 = vrot.lane.b32.xlu0 %v171, 14
      %v352 = vpop.permute.xlu0 %351
      %353 = vrot.lane.b32.xlu0 %v172, 14
      %v354 = vpop.permute.xlu0 %353
      %vm355 = vcmp.lt.s32.totalorder %v219, 14
      %v356 = vsel %vm355, %v352, %v354
      %v357 = vsel %vm355, %v354, %v352
      %vm358 = vmand %vm183, %vm213
      %v359 = vsel %vm358, 1, 0
      %v360 = vperm.slane %v359, 0
      %v361 = vperm.slane %v359, 1
      %vm362 = vcmp.eq.s32.totalorder %v360, 1
      %vm363 = vcmp.eq.s32.totalorder %v361, 1
      %v364 = vsel %vm362, %v357, 0.0
      %v365 = vsel %vm363, %v356, 0.0
      %366 = vrot.lane.b32.xlu0 %v171, 2
      %v367 = vpop.permute.xlu0 %366
      %368 = vrot.lane.b32.xlu0 %v172, 2
      %v369 = vpop.permute.xlu0 %368
      %vm370 = vcmp.lt.s32.totalorder %v219, 2
      %v371 = vsel %vm370, %v367, %v369
      %v372 = vsel %vm370, %v369, %v367
      %vm373 = vmand %vm186, %vm198
      %v374 = vsel %vm373, 1, 0
      %v375 = vperm.slane %v374, 0
      %v376 = vperm.slane %v374, 1
      %vm377 = vcmp.eq.s32.totalorder %v375, 1
      %vm378 = vcmp.eq.s32.totalorder %v376, 1
      %v379 = vsel %vm377, %v372, 0.0
      %v380 = vsel %vm378, %v371, 0.0
      %381 = vrot.lane.b32.xlu0 %v171, 1
      %v382 = vpop.permute.xlu0 %381
      %383 = vrot.lane.b32.xlu0 %v172, 1
      %v384 = vpop.permute.xlu0 %383
      %vm385 = vcmp.lt.s32.totalorder %v219, 1
      %v386 = vsel %vm385, %v382, %v384
      %v387 = vsel %vm385, %v384, %v382
      %vm388 = vmand %vm186, %vm202
      %v389 = vsel %vm388, 1, 0
      %v390 = vperm.slane %v389, 0
      %v391 = vperm.slane %v389, 1
      %vm392 = vcmp.eq.s32.totalorder %v390, 1
      %vm393 = vcmp.eq.s32.totalorder %v391, 1
      %v394 = vsel %vm392, %v387, 0.0
      %v395 = vsel %vm393, %v386, 0.0
      %396 = vrot.lane.b32.xlu0 %v171, 127
      %v397 = vpop.permute.xlu0 %396
      %398 = vrot.lane.b32.xlu0 %v172, 127
      %v399 = vpop.permute.xlu0 %398
      %vm400 = vcmp.lt.s32.totalorder %v219, 127
      %v401 = vsel %vm400, %v397, %v399
      %v402 = vsel %vm400, %v399, %v397
      %vm403 = vmand %vm186, %vm209
      %v404 = vsel %vm403, 1, 0
      %v405 = vperm.slane %v404, 0
      %v406 = vperm.slane %v404, 1
      %vm407 = vcmp.eq.s32.totalorder %v405, 1
      %vm408 = vcmp.eq.s32.totalorder %v406, 1
      %v409 = vsel %vm407, %v401, 0.0
      %v410 = vsel %vm408, %v402, 0.0
      %411 = vrot.lane.b32.xlu0 %v171, 126
      %v412 = vpop.permute.xlu0 %411
      %413 = vrot.lane.b32.xlu0 %v172, 126
      %v414 = vpop.permute.xlu0 %413
      %vm415 = vcmp.lt.s32.totalorder %v219, 126
      %v416 = vsel %vm415, %v412, %v414
      %v417 = vsel %vm415, %v414, %v412
      %vm418 = vmand %vm186, %vm213
      %v419 = vsel %vm418, 1, 0
      %v420 = vperm.slane %v419, 0
      %v421 = vperm.slane %v419, 1
      %vm422 = vcmp.eq.s32.totalorder %v420, 1
      %vm423 = vcmp.eq.s32.totalorder %v421, 1
      %v424 = vsel %vm422, %v416, 0.0
      %v425 = vsel %vm423, %v417, 0.0
      %426 = vrot.lane.b32.xlu0 %v171, 114
      %v427 = vpop.permute.xlu0 %426
      %428 = vrot.lane.b32.xlu0 %v172, 114
      %v429 = vpop.permute.xlu0 %428
      %vm430 = vcmp.lt.s32.totalorder %v219, 114
      %v431 = vsel %vm430, %v427, %v429
      %v432 = vsel %vm430, %v429, %v427
      %vm433 = vmand %vm190, %vm198
      %v434 = vsel %vm433, 1, 0
      %v435 = vperm.slane %v434, 0
      %v436 = vperm.slane %v434, 1
      %vm437 = vcmp.eq.s32.totalorder %v435, 1
      %vm438 = vcmp.eq.s32.totalorder %v436, 1
      %v439 = vsel %vm437, %v431, 0.0
      %v440 = vsel %vm438, %v432, 0.0
      %441 = vrot.lane.b32.xlu0 %v171, 113
      %v442 = vpop.permute.xlu0 %441
      %443 = vrot.lane.b32.xlu0 %v172, 113
      %v444 = vpop.permute.xlu0 %443
      %vm445 = vcmp.lt.s32.totalorder %v219, 113
      %v446 = vsel %vm445, %v442, %v444
      %v447 = vsel %vm445, %v444, %v442
      %vm448 = vmand %vm190, %vm202
      %v449 = vsel %vm448, 1, 0
      %v450 = vperm.slane %v449, 0
      %v451 = vperm.slane %v449, 1
      %vm452 = vcmp.eq.s32.totalorder %v450, 1
      %vm453 = vcmp.eq.s32.totalorder %v451, 1
      %v454 = vsel %vm452, %v446, 0.0
      %v455 = vsel %vm453, %v447, 0.0
      %456 = vrot.lane.b32.xlu0 %v171, 112
      %v457 = vpop.permute.xlu0 %456
      %458 = vrot.lane.b32.xlu0 %v172, 112
      %v459 = vpop.permute.xlu0 %458
      %vm460 = vcmp.lt.s32.totalorder %v219, 112
      %v461 = vsel %vm460, %v457, %v459
      %v462 = vsel %vm460, %v459, %v457
      %vm463 = vmand %vm190, %vm205
      %v464 = vsel %vm463, 1, 0
      %v465 = vperm.slane %v464, 0
      %v466 = vperm.slane %v464, 1
      %vm467 = vcmp.eq.s32.totalorder %v465, 1
      %vm468 = vcmp.eq.s32.totalorder %v466, 1
      %v469 = vsel %vm467, %v461, 0.0
      %v470 = vsel %vm468, %v462, 0.0
      %471 = vrot.lane.b32.xlu0 %v171, 111
      %v472 = vpop.permute.xlu0 %471
      %473 = vrot.lane.b32.xlu0 %v172, 111
      %v474 = vpop.permute.xlu0 %473
      %vm475 = vcmp.lt.s32.totalorder %v219, 111
      %v476 = vsel %vm475, %v472, %v474
      %v477 = vsel %vm475, %v474, %v472
      %vm478 = vmand %vm190, %vm209
      %v479 = vsel %vm478, 1, 0
      %v480 = vperm.slane %v479, 0
      %v481 = vperm.slane %v479, 1
      %vm482 = vcmp.eq.s32.totalorder %v480, 1
      %vm483 = vcmp.eq.s32.totalorder %v481, 1
      %v484 = vsel %vm482, %v476, 0.0
      %v485 = vsel %vm483, %v477, 0.0
      %486 = vrot.lane.b32.xlu0 %v171, 110
      %v487 = vpop.permute.xlu0 %486
      %488 = vrot.lane.b32.xlu0 %v172, 110
      %v489 = vpop.permute.xlu0 %488
      %vm490 = vcmp.lt.s32.totalorder %v219, 110
      %v491 = vsel %vm490, %v487, %v489
      %v492 = vsel %vm490, %v489, %v487
      %vm493 = vmand %vm190, %vm213
      %v494 = vsel %vm493, 1, 0
      %v495 = vperm.slane %v494, 0
      %v496 = vperm.slane %v494, 1
      %vm497 = vcmp.eq.s32.totalorder %v495, 1
      %vm498 = vcmp.eq.s32.totalorder %v496, 1
      %v499 = vsel %vm497, %v491, 0.0
      %v500 = vsel %vm498, %v492, 0.0
      %501 = vrot.lane.b32.xlu0 %v171, 98
      %v502 = vpop.permute.xlu0 %501
      %503 = vrot.lane.b32.xlu0 %v172, 98
      %v504 = vpop.permute.xlu0 %503
      %vm505 = vcmp.lt.s32.totalorder %v219, 98
      %v506 = vsel %vm505, %v502, %v504
      %v507 = vsel %vm505, %v504, %v502
      %vm508 = vmand %vm194, %vm198
      %v509 = vsel %vm508, 1, 0
      %v510 = vperm.slane %v509, 0
      %v511 = vperm.slane %v509, 1
      %vm512 = vcmp.eq.s32.totalorder %v510, 1
      %vm513 = vcmp.eq.s32.totalorder %v511, 1
      %v514 = vsel %vm512, %v506, 0.0
      %v515 = vsel %vm513, %v507, 0.0
      %516 = vrot.lane.b32.xlu0 %v171, 97
      %v517 = vpop.permute.xlu0 %516
      %518 = vrot.lane.b32.xlu0 %v172, 97
      %v519 = vpop.permute.xlu0 %518
      %vm520 = vcmp.lt.s32.totalorder %v219, 97
      %v521 = vsel %vm520, %v517, %v519
      %v522 = vsel %vm520, %v519, %v517
      %vm523 = vmand %vm194, %vm202
      %v524 = vsel %vm523, 1, 0
      %v525 = vperm.slane %v524, 0
      %v526 = vperm.slane %v524, 1
      %vm527 = vcmp.eq.s32.totalorder %v525, 1
      %vm528 = vcmp.eq.s32.totalorder %v526, 1
      %v529 = vsel %vm527, %v521, 0.0
      %v530 = vsel %vm528, %v522, 0.0
      %531 = vrot.lane.b32.xlu0 %v171, 96
      %v532 = vpop.permute.xlu0 %531
      %533 = vrot.lane.b32.xlu0 %v172, 96
      %v534 = vpop.permute.xlu0 %533
      %vm535 = vcmp.lt.s32.totalorder %v219, 96
      %v536 = vsel %vm535, %v532, %v534
      %v537 = vsel %vm535, %v534, %v532
      %vm538 = vmand %vm194, %vm205
      %v539 = vsel %vm538, 1, 0
      %v540 = vperm.slane %v539, 0
      %v541 = vperm.slane %v539, 1
      %vm542 = vcmp.eq.s32.totalorder %v540, 1
      %vm543 = vcmp.eq.s32.totalorder %v541, 1
      %v544 = vsel %vm542, %v536, 0.0
      %v545 = vsel %vm543, %v537, 0.0
      %546 = vrot.lane.b32.xlu0 %v171, 95
      %v547 = vpop.permute.xlu0 %546
      %548 = vrot.lane.b32.xlu0 %v172, 95
      %v549 = vpop.permute.xlu0 %548
      %vm550 = vcmp.lt.s32.totalorder %v219, 95
      %v551 = vsel %vm550, %v547, %v549
      %v552 = vsel %vm550, %v549, %v547
      %vm553 = vmand %vm194, %vm209
      %v554 = vsel %vm553, 1, 0
      %v555 = vperm.slane %v554, 0
      %v556 = vperm.slane %v554, 1
      %vm557 = vcmp.eq.s32.totalorder %v555, 1
      %vm558 = vcmp.eq.s32.totalorder %v556, 1
      %v559 = vsel %vm557, %v551, 0.0
      %v560 = vsel %vm558, %v552, 0.0
      %561 = vrot.lane.b32.xlu0 %v171, 94
      %v562 = vpop.permute.xlu0 %561
      %563 = vrot.lane.b32.xlu0 %v172, 94
      %v564 = vpop.permute.xlu0 %563
      %vm565 = vcmp.lt.s32.totalorder %v219, 94
      %v566 = vsel %vm565, %v562, %v564
      %v567 = vsel %vm565, %v564, %v562
      %vm568 = vmand %vm194, %vm213
      %v569 = vsel %vm568, 1, 0
      %v570 = vperm.slane %v569, 0
      %v571 = vperm.slane %v569, 1
      %vm572 = vcmp.eq.s32.totalorder %v570, 1
      %vm573 = vcmp.eq.s32.totalorder %v571, 1
      %v574 = vsel %vm572, %v566, 0.0
      %v575 = vsel %vm573, %v567, 0.0
      %v576 = vld [vmem:[%s1] sm:$0xff]
      %v577 = vld [vmem:[%s1 + $0x8] sm:$0xff]
      %v578 = vld [vmem:[%s1 + $0x10] sm:$0xff]
      %v579 = vld [vmem:[%s1 + $0x18] sm:$0xff]
      %v580 = vld [vmem:[%s1 + $0x20] sm:$0xff]
      %v581 = vld [vmem:[%s1 + $0x28] sm:$0xff]
      %vm582 = vcmask 588800
      %v584 = vsel %vm582, %v577, 0
      %v587 = vsel %vm582, %v579, 0
      %v590 = vsel %vm582, %v581, 0
      %592 = vmatpush.msra.mxu0 %v439
      %593 = vmatpush.msra.mxu0 %v424
      %594 = vmatpush.msra.mxu0 %v409
      %595 = vmatpush.msra.mxu0 %v171
      %596 = vmatpush.msra.mxu0 %v394
      %597 = vmatpush.msra.mxu0 %v379
      %598 = vmatpush.msra.mxu0 %v364
      %599 = vmatpush.msra.mxu0 %v349
      %600 = vmatpush.msra.mxu0 %v334
      %601 = vmatpush.msra.mxu0 %v319
      %602 = vmatpush.msra.mxu0 %v304
      %603 = vmatpush.msra.mxu0 %v289
      %604 = vmatpush.msra.mxu0 %v274
      %605 = vmatpush.msra.mxu0 %v259
      %606 = vmatpush.msra.mxu0 %v244
      %607 = vmatpush.msra.mxu0 %v229
      %608 = vmatmul.f32.gmra.mxu0 %v576
      %v609 = vpop.f32.mrf.mxu0
      %v610 = vadd.f32 0.0, %v609
      %611 = vmatmul.f32.gmra.mxu0 %v578
      %v612 = vpop.f32.mrf.mxu0
      %v613 = vadd.f32 0.0, %v612
      %614 = vmatmul.f32.gmra.mxu0 %v580
      %v615 = vpop.f32.mrf.mxu0
      %v616 = vadd.f32 0.0, %v615
      %617 = vdwg.mxu0
      %618 = vmatpush.msra.mxu0 0.0
      %619 = vmatpush.msra.mxu0 0.0
      %620 = vmatpush.msra.mxu0 0.0
      %621 = vmatpush.msra.mxu0 0.0
      %622 = vmatpush.msra.mxu0 0.0
      %623 = vmatpush.msra.mxu0 0.0
      %624 = vmatpush.msra.mxu0 0.0
      %625 = vmatpush.msra.mxu0 %v574
      %626 = vmatpush.msra.mxu0 %v559
      %627 = vmatpush.msra.mxu0 %v544
      %628 = vmatpush.msra.mxu0 %v529
      %629 = vmatpush.msra.mxu0 %v514
      %630 = vmatpush.msra.mxu0 %v499
      %631 = vmatpush.msra.mxu0 %v484
      %632 = vmatpush.msra.mxu0 %v469
      %633 = vmatpush.msra.mxu0 %v454
      %634 = vmatmul.f32.gmra.mxu0 %v584
      %v635 = vpop.f32.mrf.mxu0
      %v636 = vadd.f32 %v610, %v635
      %637 = vmatmul.f32.gmra.mxu0 %v587
      %v638 = vpop.f32.mrf.mxu0
      %v639 = vadd.f32 %v613, %v638
      %640 = vmatmul.f32.gmra.mxu0 %v590
      %v641 = vpop.f32.mrf.mxu0
      %v642 = vadd.f32 %v616, %v641
      %643 = vdwg.mxu0
      %644 = vmatpush.msra.mxu0 %v440
      %645 = vmatpush.msra.mxu0 %v425
      %646 = vmatpush.msra.mxu0 %v410
      %647 = vmatpush.msra.mxu0 %v172
      %648 = vmatpush.msra.mxu0 %v395
      %649 = vmatpush.msra.mxu0 %v380
      %650 = vmatpush.msra.mxu0 %v365
      %651 = vmatpush.msra.mxu0 %v350
      %652 = vmatpush.msra.mxu0 %v335
      %653 = vmatpush.msra.mxu0 %v320
      %654 = vmatpush.msra.mxu0 %v305
      %655 = vmatpush.msra.mxu0 %v290
      %656 = vmatpush.msra.mxu0 %v275
      %657 = vmatpush.msra.mxu0 %v260
      %658 = vmatpush.msra.mxu0 %v245
      %659 = vmatpush.msra.mxu0 %v230
      %660 = vmatmul.f32.gmra.mxu0 %v576
      %v661 = vpop.f32.mrf.mxu0
      %v662 = vadd.f32 0.0, %v661
      %663 = vmatmul.f32.gmra.mxu0 %v578
      %v664 = vpop.f32.mrf.mxu0
      %v665 = vadd.f32 0.0, %v664
      %666 = vmatmul.f32.gmra.mxu0 %v580
      %v667 = vpop.f32.mrf.mxu0
      %v668 = vadd.f32 0.0, %v667
      %669 = vdwg.mxu0
      %670 = vmatpush.msra.mxu0 0.0
      %671 = vmatpush.msra.mxu0 0.0
      %672 = vmatpush.msra.mxu0 0.0
      %673 = vmatpush.msra.mxu0 0.0
      %674 = vmatpush.msra.mxu0 0.0
      %675 = vmatpush.msra.mxu0 0.0
      %676 = vmatpush.msra.mxu0 0.0
      %677 = vmatpush.msra.mxu0 %v575
      %678 = vmatpush.msra.mxu0 %v560
      %679 = vmatpush.msra.mxu0 %v545
      %680 = vmatpush.msra.mxu0 %v530
      %681 = vmatpush.msra.mxu0 %v515
      %682 = vmatpush.msra.mxu0 %v500
      %683 = vmatpush.msra.mxu0 %v485
      %684 = vmatpush.msra.mxu0 %v470
      %685 = vmatpush.msra.mxu0 %v455
      %686 = vmatmul.f32.gmra.mxu0 %v584
      %v687 = vpop.f32.mrf.mxu0
      %v688 = vadd.f32 %v662, %v687
      %689 = vmatmul.f32.gmra.mxu0 %v587
      %v690 = vpop.f32.mrf.mxu0
      %v691 = vadd.f32 %v665, %v690
      %692 = vmatmul.f32.gmra.mxu0 %v590
      %v693 = vpop.f32.mrf.mxu0
      %v694 = vadd.f32 %v668, %v693
      %695 = vdwg.mxu0
      %v696 = vmax.f32 %v636, 0.0
      %v697 = vmax.f32 %v688, 0.0
      %v698 = vmax.f32 %v639, 0.0
      %v699 = vmax.f32 %v691, 0.0
      %v700 = vmax.f32 %v642, 0.0
      %v701 = vmax.f32 %v694, 0.0
      %v702 = vmax.f32 %v171, %v312
      %v703 = vmax.f32 %v172, %v311
      %v704 = vsel %vm317, %v702, %v171
      %v705 = vsel %vm318, %v703, %v172
      %v706 = vmax.f32 %v704, %v327
      %v707 = vmax.f32 %v705, %v326
      %v708 = vsel %vm332, %v706, %v704
      %v709 = vsel %vm333, %v707, %v705
      %v710 = vmax.f32 %v708, %v342
      %v711 = vmax.f32 %v709, %v341
      %v712 = vsel %vm347, %v710, %v708
      %v713 = vsel %vm348, %v711, %v709
      %v714 = vmax.f32 %v712, %v387
      %v715 = vmax.f32 %v713, %v386
      %v716 = vsel %vm392, %v714, %v712
      %v717 = vsel %vm393, %v715, %v713
      %v718 = vmax.f32 %v716, %v401
      %v719 = vmax.f32 %v717, %v402
      %v720 = vsel %vm407, %v718, %v716
      %v721 = vsel %vm408, %v719, %v717
      %v722 = vmax.f32 %v720, %v446
      %v723 = vmax.f32 %v721, %v447
      %v724 = vsel %vm452, %v722, %v720
      %v725 = vsel %vm453, %v723, %v721
      %v726 = vmax.f32 %v724, %v461
      %v727 = vmax.f32 %v725, %v462
      %v728 = vsel %vm467, %v726, %v724
      %v729 = vsel %vm468, %v727, %v725
      %v730 = vmax.f32 %v728, %v476
      %v731 = vmax.f32 %v729, %v477
      %v732 = vsel %vm482, %v730, %v728
      %v733 = vsel %vm483, %v731, %v729
      %734 = vst [vmem:[%s170] sm:$0xff] %v696
      %735 = vst [vmem:[%s170 + $0x8] sm:$0xff] %v697
      %736 = vst [vmem:[%s170 + $0x10] sm:$0xff] %v698
      %737 = vst [vmem:[%s170 + $0x18] sm:$0xff] %v699
      %738 = vst [vmem:[%s170 + $0x20] sm:$0xff] %v700
      %739 = vst [vmem:[%s170 + $0x28] sm:$0xff] %v701
      %740 = vst [vmem:[%s170 + $0x30] sm:$0xf] %v732
      %741 = vst [vmem:[%s170 + $0x38] sm:$0xf] %v733
      %p742 = scmp.lt.s32.totalorder %s14, 1
      %s743 = scalar_select %p742, %s14, 1
      %s744 = smul.addr %s743, 8
      %s745 = smul.addr %s744, 8
      %s746 = scalar_lea.vmem %s3, %s745
      // Predicated region
      $region33: #{inception_block_pallas.1} parent=31 // pred_check
        %p747 = pneg %p100
      $region34: #{inception_block_pallas.1} parent=31 // pred_check_branch
        %749 = sbr.rel (%p747) target = $region36
      $region35: #{inception_block_pallas.1} parent=31 // pred_region
        _
      $region36: #{inception_block_pallas.1} parent=31 // pred_fallthru
        _
    $region32: #{inception_block_pallas.1} parent=5 // pred_fallthru
      _
    %p750 = scmp.le.s32.totalorder 2, %s9
    // Predicated region
    $region37: #{inception_block_pallas.1} parent=5 // pred_check
      %p751 = pneg %p750
    $region38: #{inception_block_pallas.1} parent=5 // pred_check_branch
      %753 = sbr.rel (%p751) target = $region40
    $region39: #{inception_block_pallas.1} parent=5 // pred_region
      %s754 = ssub.s32 %s9, 2
      // Predicated region
      $region41: #{inception_block_pallas.1} parent=39 // pred_check
        %p755 = pneg %p106
      $region42: #{inception_block_pallas.1} parent=39 // pred_check_branch
        %757 = sbr.rel (%p755) target = $region44
      $region43: #{inception_block_pallas.1} parent=39 // pred_region
        %p758 = scmp.lt.s32.totalorder %s15, 1
        %s759 = scalar_select %p758, %s15, 1
        %s760 = smul.addr %s759, 8
        %s761 = smul.addr %s760, 8
        %s762 = scalar_lea.vmem %s3, %s761
      $region44: #{inception_block_pallas.1} parent=39 // pred_fallthru
        _
    $region40: #{inception_block_pallas.1} parent=5 // pred_fallthru
      _
  $region6: #{inception_block_pallas.1} parent=0 // loop_footer
    %s13 = sadd.s32 1, %s9
  $region7: #{inception_block_pallas.1} parent=0 // loop_footer_branch
    %8 = sbr.rel target = $region3
  $region8: #{inception_block_pallas.1} parent=0 // loop_exit
    _

</llo_original>
